<compile_context>
chip_gen: v7x
topology: tpu7x:2x2x1
jax: 0.10.0
libtpu: 0.0.40
codegen_flags: <defaults>
</compile_context>

<pallas_src>
import jax
import jax.numpy as jnp
from jax.experimental import pallas as pl
from jax.experimental.pallas import tpu as pltpu


def retriever_kernel(tok_ref, mask_ref, w1t_ref, w2t_ref, out_ref,
                     acc_ref, den_ref):
    # tok_ref : (bB, tS, H) bf16  token-embedding tile
    # mask_ref: (bB, tS)    bf16  attention-mask tile (0/1, exact in bf16)
    # w1t_ref : (H, H)      bf16  linear1 weight, transposed (resident)
    # w2t_ref : (H, Tp)     bf16  linear2 weight (templates), transposed+padded
    # out_ref : (bB, Tp)    f32   logits tile
    # acc_ref : (bB, H)     f32   running masked sum  (scratch)
    # den_ref : (bB, 1)     f32   running mask count  (scratch)
    s = pl.program_id(1)

    @pl.when(s == 0)
    def _init():
        acc_ref[...] = jnp.zeros_like(acc_ref)
        den_ref[...] = jnp.zeros_like(den_ref)

    mask = mask_ref[...]                                   # (bB, tS) bf16
    # bf16 multiply (exact: mask is 0/1), reduction accumulated in f32.
    acc_ref[...] += jnp.sum(tok_ref[...] * mask[:, :, None],
                            axis=1, dtype=jnp.float32)     # (bB, H)
    den_ref[...] += jnp.sum(mask.astype(jnp.float32),
                            axis=1, keepdims=True)         # (bB, 1)

    @pl.when(s == pl.num_programs(1) - 1)
    def _finalize():
        # guard all-zero mask rows (padded batch rows / empty sentences)
        denom = jnp.maximum(den_ref[...], 1.0)
        inv = pl.reciprocal(denom, approx=True)             # EUP, ~free
        pooled = acc_ref[...] * inv                         # (bB, H) f32
        h = jnp.dot(pooled.astype(w1t_ref.dtype), w1t_ref[...],
                    preferred_element_type=jnp.float32)     # (bB, H)
        logits = jnp.dot(h.astype(w2t_ref.dtype), w2t_ref[...],
                         preferred_element_type=jnp.float32)  # (bB, Tp)
        out_ref[...] = logits.astype(out_ref.dtype)


def _pick_batch_block(B, batch_tile):
    """Choose (bB, B_pad).  Preferences: no batch padding; >= 2 batch blocks
    (so the 'parallel' grid axis can shard across v7x's two TensorCores);
    sublane-aligned output block (bB % 8 == 0 unless the block is the whole
    batch)."""
    hi = min(batch_tile, max(B // 2, 1))
    for c in range(hi - hi % 8, 7, -8):          # multiples of 8 that divide B
        if B % c == 0:
            return c, B
    if B <= batch_tile:                          # small batch: one block, no pad
        return B, B
    bB = max(8, batch_tile - batch_tile % 8)     # fallback: pad (one-time copy)
    return bB, -(-B // bB) * bB


def bert_retriever_head(token_embeddings, attention_mask, w1t, w2t,
                        *, batch_tile=16, seq_tile=256):
    """Pooling + linear1 + linear2 of BertRetriever.

    token_embeddings: (B, S, H) encoder output — pass bf16 to avoid an extra
                      full-tensor HBM cast pass (f32 also accepted).
    attention_mask  : (B, S) 0/1 mask — bf16 preferred (exact for 0/1).
    w1t             : (H, H) = linear1.weight^T (pre-transposed once at load).
    w2t             : (H, T) = linear2.weight^T (template embeddings^T).
    Returns logits (B, T) float32.
    """
    B, S, H = token_embeddings.shape
    T = w2t.shape[1]
    cdt = jnp.bfloat16

    # The encoder should already emit bf16; an explicit cast here is an extra
    # full read+write HBM pass over (B,S,H), so only do it when needed.
    tok = token_embeddings if token_embeddings.dtype == cdt \
        else token_embeddings.astype(cdt)
    mask = attention_mask if attention_mask.dtype == cdt \
        else attention_mask.astype(cdt)
    w1t = w1t.astype(cdt)
    w2t = w2t.astype(cdt)

    # ---- tile selection --------------------------------------------------
    seq_tile = max(128, seq_tile - seq_tile % 128)
    S_pad = -(-S // 128) * 128
    tS = min(seq_tile, S_pad)
    while S_pad % tS:                       # tile always divides padded S
        tS -= 128

    bB, B_pad = _pick_batch_block(B, batch_tile)
    T_pad = -(-T // 128) * 128              # lane-dense output block

    # One-time zero padding, only for unaligned shapes.
    # TODO(synk): for odd S/B, pad upstream in the tokenizer/encoder instead to
    # avoid this extra HBM copy of the token-embedding tensor.
    if S_pad != S or B_pad != B:
        tok = jnp.pad(tok, ((0, B_pad - B), (0, S_pad - S), (0, 0)))
        mask = jnp.pad(mask, ((0, B_pad - B), (0, S_pad - S)))
    if T_pad != T:
        w2t = jnp.pad(w2t, ((0, 0), (0, T_pad - T)))

    grid = (B_pad // bB, S_pad // tS)

    # VMEM budget: double-buffered tok/mask/out blocks + resident weights
    # (x2 default buffering) + f32 scratch; raise the scoped limit to match
    # (v5e scoped default is only 16 MiB).
    blk_bytes = 2 * (bB * tS * H * 2 + bB * tS * 2 + bB * T_pad * 4)
    w_bytes = 2 * (H * H + H * T_pad) * 2
    scratch_bytes = bB * (H + 128) * 4
    vmem_limit = min(100 * 1024 * 1024,
                     max(32 * 1024 * 1024,
                         blk_bytes + w_bytes + scratch_bytes + (4 << 20)))

    flops = 2 * B_pad * S_pad * H + 2 * B_pad * H * H + 2 * B_pad * H * T_pad
    bytes_accessed = (tok.size * 2 + mask.size * 2
                      + w1t.size * 2 + w2t.size * 2 + B_pad * T_pad * 4)

    out = pl.pallas_call(
        retriever_kernel,
        out_shape=jax.ShapeDtypeStruct((B_pad, T_pad), jnp.float32),
        grid_spec=pltpu.PrefetchScalarGridSpec(
            num_scalar_prefetch=0,
            grid=grid,
            in_specs=[
                pl.BlockSpec((bB, tS, H), lambda b, s: (b, s, 0)),   # token tile
                pl.BlockSpec((bB, tS), lambda b, s: (b, s)),         # mask tile
                pl.BlockSpec((H, H), lambda b, s: (0, 0)),           # W1^T resident
                pl.BlockSpec((H, T_pad), lambda b, s: (0, 0)),       # W2^T resident
            ],
            out_specs=pl.BlockSpec((bB, T_pad), lambda b, s: (b, 0)),
            scratch_shapes=[
                pltpu.VMEM((bB, H), jnp.float32),   # masked-sum accumulator
                pltpu.VMEM((bB, 1), jnp.float32),   # mask-count accumulator
            ],
        ),
        compiler_params=pltpu.CompilerParams(
            dimension_semantics=("parallel", "arbitrary"),
            vmem_limit_bytes=vmem_limit),
        cost_estimate=pl.CostEstimate(
            flops=flops, transcendentals=0, bytes_accessed=bytes_accessed),
    )(tok, mask, w1t, w2t)

    return out[:B, :T]


if __name__ == "__main__":
    # Small-but-aligned shapes consistent with the module's forward:
    #   B sentences, S tokens each, hidden size H, num_template templates.
    B, S, H, T = 2, 512, 128, 16
    rescale = 2.0

    key = jax.random.PRNGKey(0)
    k_tok, k_tmpl = jax.random.split(key)

    # Synthetic stand-in for the BERT encoder output; the encoder's last op
    # should emit bf16 so the retriever head reads it with no extra cast pass.
    token_embeddings = jax.random.normal(
        k_tok, (B, S, H), dtype=jnp.float32).astype(jnp.bfloat16)

    # Variable-length attention mask (0/1 is exact in bf16).
    lengths = jnp.array([512, 301], dtype=jnp.int32)
    attention_mask = (jnp.arange(S)[None, :] < lengths[:, None]).astype(jnp.bfloat16)

    # Parameters, initialized exactly as in the module's __init__:
    #   linear1.weight = eye(H) / rescale (no bias)
    #   linear2.weight = template embeddings (num_template, H), bias zero
    w1 = jnp.eye(H, dtype=jnp.float32) / rescale
    w2 = jax.random.normal(k_tmpl, (T, H), dtype=jnp.float32)

    # Pre-transpose once at weight-load time (no per-call transpose traffic).
    w1t = jnp.asarray(w1.T)   # (H, H)
    w2t = jnp.asarray(w2.T)   # (H, T)

    logits = bert_retriever_head(token_embeddings, attention_mask, w1t, w2t)
    logits = jax.block_until_ready(logits)

    # Pure-JAX reference with the same bf16 quantization / f32 accumulation.
    tok_f32 = token_embeddings.astype(jnp.float32)
    mask_f32 = attention_mask.astype(jnp.float32)
    denom = jnp.maximum(mask_f32.sum(1, keepdims=True), 1.0)
    pooled_ref = (mask_f32[:, :, None] * tok_f32).sum(1) / denom
    h_ref = jnp.dot(pooled_ref.astype(jnp.bfloat16), w1t.astype(jnp.bfloat16),
                    preferred_element_type=jnp.float32)
    logits_ref = jnp.dot(h_ref.astype(jnp.bfloat16), w2t.astype(jnp.bfloat16),
                         preferred_element_type=jnp.float32)

    assert logits.shape == (B, T)
    err = float(jnp.max(jnp.abs(logits - logits_ref)))
    assert jnp.allclose(logits, logits_ref, atol=1e-2, rtol=1e-2), err
    print("KERNEL_OK")
</pallas_src>

<mosaic_0001>
module attributes {stable_mosaic.version = 11 : i64} {
  func.func @retriever_kernel(%arg0: i32, %arg1: i32, %arg2: memref<2x256x128xbf16, #tpu.memory_space<vmem>>, %arg3: memref<2x256xbf16, #tpu.memory_space<vmem>>, %arg4: memref<128x128xbf16, #tpu.memory_space<vmem>>, %arg5: memref<128x128xbf16, #tpu.memory_space<vmem>>, %arg6: memref<2x128xf32, #tpu.memory_space<vmem>>, %arg7: memref<2x128xf32, #tpu.memory_space<vmem>>, %arg8: memref<2x1xf32, #tpu.memory_space<vmem>>) attributes {dimension_semantics = [#tpu.dimension_semantics<parallel>, #tpu.dimension_semantics<arbitrary>], iteration_bounds = array<i64: 1, 2>, scalar_prefetch = 0 : i64, scratch_operands = 2 : i64, tpu.core_type = #tpu.core_type<tc>, window_params = [{transform_indices = @transform_0, window_bounds = array<i64: 2, 256, 128>}, {transform_indices = @transform_1, window_bounds = array<i64: 2, 256>}, {pipeline_mode = #tpu.pipeline_mode<synchronous>, transform_indices = @transform_2, window_bounds = array<i64: 128, 128>}, {pipeline_mode = #tpu.pipeline_mode<synchronous>, transform_indices = @transform_3, window_bounds = array<i64: 128, 128>}, {transform_indices = @transform_4, window_bounds = array<i64: 2, 128>}]} {
    %c0_i32 = arith.constant 0 : i32
    %0 = arith.cmpi eq, %arg1, %c0_i32 : i32
    %1 = arith.extui %0 : i1 to i32
    %c0_i32_0 = arith.constant 0 : i32
    %2 = arith.cmpi ne, %1, %c0_i32_0 : i32
    scf.if %2 {
      %cst_15 = arith.constant 0.000000e+00 : f32
      %22 = vector.broadcast %cst_15 : f32 to vector<2x128xf32>
      %c0_16 = arith.constant 0 : index
      %c0_17 = arith.constant 0 : index
      %23 = vector.load %arg7[%c0_16, %c0_17] : memref<2x128xf32, #tpu.memory_space<vmem>>, vector<2x128xf32>
      tpu.vector_store %arg7[%c0_16, %c0_17], %22 {strides = array<i32>} : memref<2x128xf32, #tpu.memory_space<vmem>>, vector<2x128xf32>,
      %cst_18 = arith.constant 0.000000e+00 : f32
      %24 = vector.broadcast %cst_18 : f32 to vector<2x1xf32>
      %c0_19 = arith.constant 0 : index
      %c0_20 = arith.constant 0 : index
      %25 = vector.load %arg8[%c0_19, %c0_20] : memref<2x1xf32, #tpu.memory_space<vmem>>, vector<2x1xf32>
      tpu.vector_store %arg8[%c0_19, %c0_20], %24 {strides = array<i32>} : memref<2x1xf32, #tpu.memory_space<vmem>>, vector<2x1xf32>,
    } else {
    }
    %c0 = arith.constant 0 : index
    %c0_1 = arith.constant 0 : index
    %3 = vector.load %arg3[%c0, %c0_1] : memref<2x256xbf16, #tpu.memory_space<vmem>>, vector<2x256xbf16>
    %c0_2 = arith.constant 0 : index
    %c0_3 = arith.constant 0 : index
    %4 = vector.load %arg7[%c0_2, %c0_3] : memref<2x128xf32, #tpu.memory_space<vmem>>, vector<2x128xf32>
    %c0_4 = arith.constant 0 : index
    %c0_5 = arith.constant 0 : index
    %c0_6 = arith.constant 0 : index
    %5 = vector.load %arg2[%c0_4, %c0_5, %c0_6] : memref<2x256x128xbf16, #tpu.memory_space<vmem>>, vector<2x256x128xbf16>
    %6 = vector.shape_cast %3 : vector<2x256xbf16> to vector<2x256x1xbf16>
    %7 = vector.broadcast %6 : vector<2x256x1xbf16> to vector<2x256x128xbf16>
    %8 = arith.mulf %5, %7 : vector<2x256x128xbf16>
    %9 = arith.extf %8 : vector<2x256x128xbf16> to vector<2x256x128xf32>
    %cst = arith.constant dense<0.000000e+00> : vector<2x128xf32>
    %10 = vector.multi_reduction <add>, %9, %cst [1] : vector<2x256x128xf32> to vector<2x128xf32>
    %11 = arith.addf %4, %10 : vector<2x128xf32>
    %c0_7 = arith.constant 0 : index
    %c0_8 = arith.constant 0 : index
    %12 = vector.load %arg7[%c0_7, %c0_8] : memref<2x128xf32, #tpu.memory_space<vmem>>, vector<2x128xf32>
    tpu.vector_store %arg7[%c0_7, %c0_8], %11 {strides = array<i32>} : memref<2x128xf32, #tpu.memory_space<vmem>>, vector<2x128xf32>,
    %c0_9 = arith.constant 0 : index
    %c0_10 = arith.constant 0 : index
    %13 = vector.load %arg8[%c0_9, %c0_10] : memref<2x1xf32, #tpu.memory_space<vmem>>, vector<2x1xf32>
    %14 = arith.extf %3 : vector<2x256xbf16> to vector<2x256xf32>
    %cst_11 = arith.constant dense<0.000000e+00> : vector<2xf32>
    %15 = vector.multi_reduction <add>, %14, %cst_11 [1] : vector<2x256xf32> to vector<2xf32>
    %16 = vector.shape_cast %15 : vector<2xf32> to vector<2x1xf32>
    %17 = arith.addf %13, %16 : vector<2x1xf32>
    %c0_12 = arith.constant 0 : index
    %c0_13 = arith.constant 0 : index
    %18 = vector.load %arg8[%c0_12, %c0_13] : memref<2x1xf32, #tpu.memory_space<vmem>>, vector<2x1xf32>
    tpu.vector_store %arg8[%c0_12, %c0_13], %17 {strides = array<i32>} : memref<2x1xf32, #tpu.memory_space<vmem>>, vector<2x1xf32>,
    %c1_i32 = arith.constant 1 : i32
    %19 = arith.cmpi eq, %arg1, %c1_i32 : i32
    %20 = arith.extui %19 : i1 to i32
    %c0_i32_14 = arith.constant 0 : i32
    %21 = arith.cmpi ne, %20, %c0_i32_14 : i32
    scf.if %21 {
      %c0_15 = arith.constant 0 : index
      %c0_16 = arith.constant 0 : index
      %22 = vector.load %arg8[%c0_15, %c0_16] : memref<2x1xf32, #tpu.memory_space<vmem>>, vector<2x1xf32>
      %cst_17 = arith.constant 1.000000e+00 : f32
      %23 = vector.broadcast %cst_17 : f32 to vector<2x1xf32>
      %24 = arith.maximumf %22, %23 : vector<2x1xf32>
      %25 = tpu.reciprocal %24 {approx = true} : vector<2x1xf32> -> vector<2x1xf32>
      %c0_18 = arith.constant 0 : index
      %c0_19 = arith.constant 0 : index
      %26 = vector.load %arg7[%c0_18, %c0_19] : memref<2x128xf32, #tpu.memory_space<vmem>>, vector<2x128xf32>
      %27 = vector.broadcast %25 : vector<2x1xf32> to vector<2x128xf32>
      %28 = arith.mulf %26, %27 : vector<2x128xf32>
      %29 = arith.truncf %28 : vector<2x128xf32> to vector<2x128xbf16>
      %c0_20 = arith.constant 0 : index
      %c0_21 = arith.constant 0 : index
      %30 = vector.load %arg4[%c0_20, %c0_21] : memref<128x128xbf16, #tpu.memory_space<vmem>>, vector<128x128xbf16>
      %cst_22 = arith.constant dense<0.000000e+00> : vector<2x128xf32>
      %31 = tpu.matmul %29, %30, %cst_22 {dimension_numbers = #tpu.dot_dimension_numbers<[1], [0], [0], [1], [0, 0, 1, 1], [], []>} : vector<2x128xbf16>, vector<128x128xbf16>, vector<2x128xf32> -> vector<2x128xf32>
      %32 = arith.truncf %31 : vector<2x128xf32> to vector<2x128xbf16>
      %c0_23 = arith.constant 0 : index
      %c0_24 = arith.constant 0 : index
      %33 = vector.load %arg5[%c0_23, %c0_24] : memref<128x128xbf16, #tpu.memory_space<vmem>>, vector<128x128xbf16>
      %cst_25 = arith.constant dense<0.000000e+00> : vector<2x128xf32>
      %34 = tpu.matmul %32, %33, %cst_25 {dimension_numbers = #tpu.dot_dimension_numbers<[1], [0], [0], [1], [0, 0, 1, 1], [], []>} : vector<2x128xbf16>, vector<128x128xbf16>, vector<2x128xf32> -> vector<2x128xf32>
      %c0_26 = arith.constant 0 : index
      %c0_27 = arith.constant 0 : index
      %35 = vector.load %arg6[%c0_26, %c0_27] : memref<2x128xf32, #tpu.memory_space<vmem>>, vector<2x128xf32>
      tpu.vector_store %arg6[%c0_26, %c0_27], %34 {strides = array<i32>} : memref<2x128xf32, #tpu.memory_space<vmem>>, vector<2x128xf32>,
    } else {
    }
    return
  }
  func.func @transform_0(%arg0: i32, %arg1: i32) -> (i32, i32, i32) {
    %c0_i32 = arith.constant 0 : i32
    %c0_i32_0 = arith.constant 0 : i32
    return %arg0, %arg1, %c0_i32 : i32, i32, i32
  }
  func.func @transform_1(%arg0: i32, %arg1: i32) -> (i32, i32) {
    %c0_i32 = arith.constant 0 : i32
    return %arg0, %arg1 : i32, i32
  }
  func.func @transform_2(%arg0: i32, %arg1: i32) -> (i32, i32) {
    %c0_i32 = arith.constant 0 : i32
    %c0_i32_0 = arith.constant 0 : i32
    %c0_i32_1 = arith.constant 0 : i32
    return %c0_i32, %c0_i32_0 : i32, i32
  }
  func.func @transform_3(%arg0: i32, %arg1: i32) -> (i32, i32) {
    %c0_i32 = arith.constant 0 : i32
    %c0_i32_0 = arith.constant 0 : i32
    %c0_i32_1 = arith.constant 0 : i32
    return %c0_i32, %c0_i32_0 : i32, i32
  }
  func.func @transform_4(%arg0: i32, %arg1: i32) -> (i32, i32) {
    %c0_i32 = arith.constant 0 : i32
    %c0_i32_0 = arith.constant 0 : i32
    return %arg0, %c0_i32 : i32, i32
  }
}

</mosaic_0001>

<llo_original>
// kernel: tpu_custom_call.1
$region0: #{tpu_custom_call.1}
  #allocation0 [shape = 'u32[]', space=smem, size = 0x4, offset = 0x4, fixed_abs, tag = 'smem constant byte address 0x4 - core index']
  #allocation1 [shape = 'u32[144,128]{1,0:T(1,128)}', space=vmem, size = 0x12000, scoped, tag = 'internal scratch']
  #allocation2 [shape = 'f32[2,128]{1,0:T(2,128)}', space=vmem, size = 0x400, scoped, tag = 'scratch operand']
  #allocation3 [shape = 'f32[2,1]{1,0:T(2,128)}', space=vmem, size = 0x400, scoped, tag = 'scratch operand']
  #allocation13 [shape = 's32[]', space=sflag, size = 0x4, offset = 0, fixed_abs, tag = 'sflag constant byte address 0x0 - dummy sync flag']
  %s0 = inlined_call_operand.hbm [shape: bf16[2,512,128], index: 0, kind: input, shape index: {}]
  %s1 = inlined_call_operand.hbm [shape: bf16[2,512], index: 1, kind: input, shape index: {}]
  %s2 = inlined_call_operand.hbm [shape: bf16[128,128], index: 2, kind: input, shape index: {}]
  %s3 = inlined_call_operand.hbm [shape: bf16[128,128], index: 3, kind: input, shape index: {}]
  %s4 = inlined_call_operand.hbm [shape: f32[2,128], index: 4, kind: output, shape index: {}]
  %s5 = sld [smem:[#allocation0]]
  $region73: #{tpu_custom_call.1} parent=0
    _
  %s7 = ssub.s32 1, %s5
  %s8 = scalar_select 0, %s7, %s5
  $region1: #{tpu_custom_call.1} parent=0
    #allocation4 [shape = 'u8[262144]{0}', space=vmem, size = 0x40000, scoped, tag = 'input window, operand 0']
    #allocation5 [shape = 's32[2]{0}', space=sflag, size = 0x8, scoped, tag = 'scoped memory for tpu_custom_call.1']
    #allocation6 [shape = 's32[2]{0}', space=sflag, size = 0x8, scoped, tag = 'scoped memory for tpu_custom_call.1']
    #allocation7 [shape = 'u8[2048]{0}', space=vmem, size = 0x800, scoped, tag = 'input window, operand 1']
    #allocation8 [shape = 's32[2]{0}', space=sflag, size = 0x8, scoped, tag = 'scoped memory for tpu_custom_call.1']
    #allocation9 [shape = 'u8[32768]{0}', space=vmem, size = 0x8000, scoped, tag = 'input window, operand 2, single buffered']
    #allocation10 [shape = 'u8[32768]{0}', space=vmem, size = 0x8000, scoped, tag = 'input window, operand 3, single buffered']
    #allocation11 [shape = 's32[1]{0}', space=sflag, size = 0x4, scoped, tag = 'scoped memory for tpu_custom_call.1']
    #allocation12 [shape = 'u8[1024]{0}', space=vmem, size = 0x400, scoped, tag = 'output window, operand 0, single buffered']
    %9 = vsyncpa [#allocation5], 0
    %s10 = scalar_lea.sflag [#allocation5], 1
    %11 = vsyncpa %s10, 0
    %12 = vsyncpa [#allocation8], 0
    %s13 = scalar_lea.sflag [#allocation8], 1
    %14 = vsyncpa %s13, 0
    %15 = vsyncpa [#allocation11], 0
    %16 = vsyncpa [#allocation6], 0
    loop: start=0, step=1, limit=4
    $region2: #{tpu_custom_call.1} parent=1 // loop_pre_header
      _
    $region3: #{tpu_custom_call.1} parent=1 // loop_header
      %s18 = sphi 0, %s22
      %p19 = scmp.ge.s32.totalorder %s18, 4
      %s25 = sphi 0, %s37
      %s26 = sphi 0, %s33
      %s27 = sphi 0, %s25
      %s28 = sphi 0, %s26
      %s29 = sphi 0, %s27
      %s30 = sphi 0, %s28
      %s42 = sphi 0, %s44
      %s45 = sphi 0, %s42
      %s46 = sphi 0, %s45
      %s62 = sphi 0, %s46
      %s70 = sphi 0, %s72
      %s73 = sphi 0, %s70
      %s74 = sphi 0, %s73
      %s90 = sphi 0, %s74
      %s94 = sphi 0, %s94
      %s96 = sphi 0, %s94
      %s97 = sphi 0, %s96
      %s111 = sphi 0, %s97
      %s115 = sphi 0, %s115
      %s117 = sphi 0, %s115
      %s118 = sphi 0, %s117
      %s132 = sphi 0, %s118
      %s138 = sphi 0, %s140
      %s141 = sphi 0, %s138
      %s142 = sphi 0, %s141
      %s158 = sphi 0, %s142
    $region4: #{tpu_custom_call.1} parent=1 // loop_header_branch
      %21 = sbr.rel (%p19) target = $region8
    $region5: #{tpu_custom_call.1} parent=1 // loop_body
      %s23 = ssub.s32 %s18, 1
      %s24 = ssub.s32 %s18, 2
      %s31 = sadd.s32 1, %s26
      %p32 = scmp.ge.s32.totalorder %s31, 2
      %s33 = scalar_select %p32, 0, %s31
      %s34 = sadd.s32 1, %s25
      %s35 = scalar_select %p32, %s34, %s25
      %p36 = scmp.ge.s32.totalorder %s35, 1
      %s37 = scalar_select %p36, 0, %s35
      %s38 = ssub.s32 %s25, %s37
      %s39 = ssub.s32 %s26, %s33
      %s40 = sor.u32 %s38, %s39
      %p41 = scmp.eq.s32.totalorder %s40, 0
      %s43 = sadd.s32 %s42, 1
      %s44 = scalar_select %p41, %s42, %s43
      %p47 = pneg %p41
      %p48 = scmp.eq.s32.totalorder %s18, 1
      %p49 = por %p47, %p48
      %p50 = scmp.ne.s32.totalorder %s42, %s45
      %p51 = scmp.eq.s32.totalorder %s18, 0
      %p52 = por %p50, %p51
      %p53 = scmp.ne.s32.totalorder %s42, %s45
      %p54 = scmp.eq.s32.totalorder %s23, 1
      %p55 = por %p53, %p54
      %p56 = scmp.ne.s32.totalorder %s45, %s46
      %p57 = scmp.eq.s32.totalorder %s23, 0
      %p58 = por %p56, %p57
      %p59 = scmp.ne.s32.totalorder %s45, %s46
      %p60 = scmp.eq.s32.totalorder %s24, 1
      %p61 = por %p59, %p60
      %p63 = scmp.ne.s32.totalorder %s46, %s62
      %p64 = scmp.eq.s32.totalorder %s24, 0
      %p65 = por %p63, %p64
      %s66 = ssub.s32 %s25, %s37
      %s67 = ssub.s32 %s26, %s33
      %s68 = sor.u32 %s66, %s67
      %p69 = scmp.eq.s32.totalorder %s68, 0
      %s71 = sadd.s32 %s70, 1
      %s72 = scalar_select %p69, %s70, %s71
      %p75 = pneg %p69
      %p76 = scmp.eq.s32.totalorder %s18, 1
      %p77 = por %p75, %p76
      %p78 = scmp.ne.s32.totalorder %s70, %s73
      %p79 = scmp.eq.s32.totalorder %s18, 0
      %p80 = por %p78, %p79
      %p81 = scmp.ne.s32.totalorder %s70, %s73
      %p82 = scmp.eq.s32.totalorder %s23, 1
      %p83 = por %p81, %p82
      %p84 = scmp.ne.s32.totalorder %s73, %s74
      %p85 = scmp.eq.s32.totalorder %s23, 0
      %p86 = por %p84, %p85
      %p87 = scmp.ne.s32.totalorder %s73, %s74
      %p88 = scmp.eq.s32.totalorder %s24, 1
      %p89 = por %p87, %p88
      %p91 = scmp.ne.s32.totalorder %s74, %s90
      %p92 = scmp.eq.s32.totalorder %s24, 0
      %p93 = por %p91, %p92
      %s95 = sadd.s32 %s94, 1
      %p98 = scmp.eq.s32.totalorder %s18, 1
      %p99 = scmp.ne.s32.totalorder %s94, %s96
      %p100 = scmp.eq.s32.totalorder %s18, 0
      %p101 = por %p99, %p100
      %p102 = scmp.ne.s32.totalorder %s94, %s96
      %p103 = scmp.eq.s32.totalorder %s23, 1
      %p104 = por %p102, %p103
      %p105 = scmp.ne.s32.totalorder %s96, %s97
      %p106 = scmp.eq.s32.totalorder %s23, 0
      %p107 = por %p105, %p106
      %p108 = scmp.ne.s32.totalorder %s96, %s97
      %p109 = scmp.eq.s32.totalorder %s24, 1
      %p110 = por %p108, %p109
      %p112 = scmp.ne.s32.totalorder %s97, %s111
      %p113 = scmp.eq.s32.totalorder %s24, 0
      %p114 = por %p112, %p113
      %s116 = sadd.s32 %s115, 1
      %p119 = scmp.eq.s32.totalorder %s18, 1
      %p120 = scmp.ne.s32.totalorder %s115, %s117
      %p121 = scmp.eq.s32.totalorder %s18, 0
      %p122 = por %p120, %p121
      %p123 = scmp.ne.s32.totalorder %s115, %s117
      %p124 = scmp.eq.s32.totalorder %s23, 1
      %p125 = por %p123, %p124
      %p126 = scmp.ne.s32.totalorder %s117, %s118
      %p127 = scmp.eq.s32.totalorder %s23, 0
      %p128 = por %p126, %p127
      %p129 = scmp.ne.s32.totalorder %s117, %s118
      %p130 = scmp.eq.s32.totalorder %s24, 1
      %p131 = por %p129, %p130
      %p133 = scmp.ne.s32.totalorder %s118, %s132
      %p134 = scmp.eq.s32.totalorder %s24, 0
      %p135 = por %p133, %p134
      %s136 = ssub.s32 %s25, %s37
      %p137 = scmp.eq.s32.totalorder %s136, 0
      %s139 = sadd.s32 %s138, 1
      %s140 = scalar_select %p137, %s138, %s139
      %p143 = pneg %p137
      %p144 = scmp.eq.s32.totalorder %s18, 1
      %p145 = por %p143, %p144
      %p146 = scmp.ne.s32.totalorder %s138, %s141
      %p147 = scmp.eq.s32.totalorder %s18, 0
      %p148 = por %p146, %p147
      %p149 = scmp.ne.s32.totalorder %s138, %s141
      %p150 = scmp.eq.s32.totalorder %s23, 1
      %p151 = por %p149, %p150
      %p152 = scmp.ne.s32.totalorder %s141, %s142
      %p153 = scmp.eq.s32.totalorder %s23, 0
      %p154 = por %p152, %p153
      %p155 = scmp.ne.s32.totalorder %s141, %s142
      %p156 = scmp.eq.s32.totalorder %s24, 1
      %p157 = por %p155, %p156
      %p159 = scmp.ne.s32.totalorder %s142, %s158
      %p160 = scmp.eq.s32.totalorder %s24, 0
      %p161 = por %p159, %p160
      %p162 = scmp.le.s32.totalorder 1, %s18
      %p163 = scmp.lt.s32.totalorder %s18, 3
      %p164 = pnand %p162, %p163
      %p165 = pneg %p164
      // Predicated region
      $region9: #{tpu_custom_call.1} parent=5 // pred_check
        _
      $region10: #{tpu_custom_call.1} parent=5 // pred_check_branch
        %167 = sbr.rel (%p164) target = $region12
      $region11: #{tpu_custom_call.1} parent=5 // pred_region
        %s168 = ssub.s32 %s18, 1
        // Predicated region
        $region13: #{tpu_custom_call.1} parent=11 // pred_check
          %p169 = pneg %p107
        $region14: #{tpu_custom_call.1} parent=11 // pred_check_branch
          %171 = sbr.rel (%p169) target = $region16
        $region15: #{tpu_custom_call.1} parent=11 // pred_region
          %s173 = ssub.s32 1024, 1024
          %174 = vsyncadd [#allocation8], %s173
          %s175 = sshll.u32 [#allocation9], 4
          %s176 = int_to_ptr.vmem [resolvable:$true] %s175
          %181 = dma.hbm_to_vmem [thread:$0]  %s2, 1024, %s176, [#allocation8], 64, 64, 4
        $region16: #{tpu_custom_call.1} parent=11 // pred_fallthru
          _
        // Predicated region
        $region17: #{tpu_custom_call.1} parent=11 // pred_check
          %p182 = pneg %p128
        $region18: #{tpu_custom_call.1} parent=11 // pred_check_branch
          %184 = sbr.rel (%p182) target = $region20
        $region19: #{tpu_custom_call.1} parent=11 // pred_region
          %s186 = ssub.s32 1024, 1024
          %187 = vsyncadd [#allocation11], %s186
          %s188 = sshll.u32 [#allocation10], 4
          %s189 = int_to_ptr.vmem [resolvable:$true] %s188
          %194 = dma.hbm_to_vmem [thread:$0]  %s3, 1024, %s189, [#allocation11], 64, 64, 4
        $region20: #{tpu_custom_call.1} parent=11 // pred_fallthru
          _
      $region12: #{tpu_custom_call.1} parent=5 // pred_fallthru
        _
      %p195 = scmp.lt.s32.totalorder %s18, 2
      // Predicated region
      $region21: #{tpu_custom_call.1} parent=5 // pred_check
        %p196 = pneg %p195
      $region22: #{tpu_custom_call.1} parent=5 // pred_check_branch
        %198 = sbr.rel (%p196) target = $region24
      $region23: #{tpu_custom_call.1} parent=5 // pred_region
        // Predicated region
        $region25: #{tpu_custom_call.1} parent=23 // pred_check
          %p199 = pneg %p52
        $region26: #{tpu_custom_call.1} parent=23 // pred_check_branch
          %201 = sbr.rel (%p199) target = $region28
        $region27: #{tpu_custom_call.1} parent=23 // pred_region
          #allocation14 [shape = 'u32[6]{0}', space=smem, size = 0x18, scoped, tag = 'DMA stride descriptor']
          %s202 = sand.u32 %s42, 1
          %s203 = scalar_lea.sflag [#allocation5], %s202
          %s204 = sand.u32 %s42, 1
          %s205 = smul.addr %s204, 256
          %s206 = scalar_lea.vmem [#allocation4], %s205
          %s207 = smul.u32 2, %s25
          %s208 = smul.u32 32, %s26
          %s210 = ssub.s32 4096, 4096
          %211 = vsyncadd %s203, %s210
          %s212 = smul.addr %s207, 64
          %s213 = sadd.s32 %s208, %s212
          %s214 = smul.addr %s213, 64
          %s215 = scalar_lea.hbm %s0, %s214
          %s217 = sshll.u32 1, 14
          %s218 = sxor.u32 4294967295, %s217
          %s220 = sld [smem:[#allocation0]]
          %s221 = sadd.s32 2, %s220
          %s223 = sshll.u32 7, 26
          %s224 = sxor.u32 4294967295, %s223
          %s225 = sand.u32 0, %s224
          %s226 = sshll.u32 %s221, 26
          %s227 = sor.u32 %s225, %s226
          %s228 = sshll.u32 %s206, 4
          %s229 = int_to_ptr.vmem [resolvable:$true] %s228
          %235 = sst [smem:[#allocation14]] 4096
          %s236 = scalar_lea.smem [#allocation14], 1
          %237 = sst [smem:[%s236]] 2048
          %s238 = scalar_lea.smem [#allocation14], 2
          %239 = sst [smem:[%s238]] 32
          %s240 = scalar_lea.smem [#allocation14], 3
          %241 = sst [smem:[%s240]] 64
          %s242 = scalar_lea.smem [#allocation14], 4
          %243 = sst [smem:[%s242]] 64
          %s244 = scalar_lea.smem [#allocation14], 5
          %245 = sst [smem:[%s244]] 4
          %247 = dma.general %s215, 4096, %s229, %s203, [#allocation13], [#allocation14], %s227, 0
        $region28: #{tpu_custom_call.1} parent=23 // pred_fallthru
          _
        // Predicated region
        $region29: #{tpu_custom_call.1} parent=23 // pred_check
          %p248 = pneg %p80
        $region30: #{tpu_custom_call.1} parent=23 // pred_check_branch
          %250 = sbr.rel (%p248) target = $region32
        $region31: #{tpu_custom_call.1} parent=23 // pred_region
          %s251 = sand.u32 %s18, 1
          %s252 = scalar_lea.sflag [#allocation8], %s251
          %s253 = sand.u32 %s70, 1
          %s254 = smul.addr %s253, 2
          %s255 = scalar_lea.vmem [#allocation7], %s254
          %s256 = smul.u32 2, %s26
          %s258 = ssub.s32 32, 32
          %259 = vsyncadd %s252, %s258
          %s260 = smul.addr %s25, 4
          %s261 = sadd.s32 %s256, %s260
          %s262 = smul.addr %s261, 16
          %s263 = scalar_lea.hbm %s1, %s262
          %s265 = sshll.u32 %s255, 4
          %s266 = int_to_ptr.vmem [resolvable:$true] %s265
          %268 = dma.hbm_to_vmem [thread:$0]  %s263, 32, %s266, %s252
        $region32: #{tpu_custom_call.1} parent=23 // pred_fallthru
          _
      $region24: #{tpu_custom_call.1} parent=5 // pred_fallthru
        _
      %p269 = scmp.le.s32.totalorder 1, %s18
      %p270 = scmp.lt.s32.totalorder %s18, 3
      %p271 = pnand %p269, %p270
      %p272 = pneg %p271
      // Predicated region
      $region33: #{tpu_custom_call.1} parent=5 // pred_check
        _
      $region34: #{tpu_custom_call.1} parent=5 // pred_check_branch
        %274 = sbr.rel (%p271) target = $region36
      $region35: #{tpu_custom_call.1} parent=5 // pred_region
        %s275 = ssub.s32 %s18, 1
        %s276 = sand.u32 %s45, 1
        %s277 = scalar_lea.sflag [#allocation5], %s276
        %s278 = sand.u32 %s45, 1
        %s279 = smul.addr %s278, 256
        %s280 = scalar_lea.vmem [#allocation4], %s279
        // Predicated region
        $region37: #{tpu_custom_call.1} parent=35 // pred_check
          %p281 = pneg %p58
        $region38: #{tpu_custom_call.1} parent=35 // pred_check_branch
          %283 = sbr.rel (%p281) target = $region40
        $region39: #{tpu_custom_call.1} parent=35 // pred_region
          %284 = dma.done %s277, 4096
        $region40: #{tpu_custom_call.1} parent=35 // pred_fallthru
          _
        %s285 = sand.u32 %s23, 1
        %s286 = scalar_lea.sflag [#allocation8], %s285
        %s287 = sand.u32 %s73, 1
        %s288 = smul.addr %s287, 2
        %s289 = scalar_lea.vmem [#allocation7], %s288
        // Predicated region
        $region41: #{tpu_custom_call.1} parent=35 // pred_check
          %p290 = pneg %p86
        $region42: #{tpu_custom_call.1} parent=35 // pred_check_branch
          %292 = sbr.rel (%p290) target = $region44
        $region43: #{tpu_custom_call.1} parent=35 // pred_region
          %293 = dma.done %s286, 32
        $region44: #{tpu_custom_call.1} parent=35 // pred_fallthru
          _
        // Predicated region
        $region45: #{tpu_custom_call.1} parent=35 // pred_check
          %p294 = pneg %p107
        $region46: #{tpu_custom_call.1} parent=35 // pred_check_branch
          %296 = sbr.rel (%p294) target = $region48
        $region47: #{tpu_custom_call.1} parent=35 // pred_region
          %297 = dma.done [#allocation8], 1024
        $region48: #{tpu_custom_call.1} parent=35 // pred_fallthru
          _
        // Predicated region
        $region49: #{tpu_custom_call.1} parent=35 // pred_check
          %p298 = pneg %p128
        $region50: #{tpu_custom_call.1} parent=35 // pred_check_branch
          %300 = sbr.rel (%p298) target = $region52
        $region51: #{tpu_custom_call.1} parent=35 // pred_region
          %301 = dma.done [#allocation11], 1024
        $region52: #{tpu_custom_call.1} parent=35 // pred_fallthru
          _
        %s302 = sand.u32 %s45, 1
        %s303 = scalar_lea.sflag [#allocation5], %s302
        %s304 = sand.u32 %s45, 1
        %s305 = smul.addr %s304, 256
        %s306 = scalar_lea.vmem [#allocation4], %s305
        %p307 = pneg %p58
        %p308 = pneg %p55
        %s309 = sand.u32 %s23, 1
        %s310 = scalar_lea.sflag [#allocation8], %s309
        %s311 = sand.u32 %s73, 1
        %s312 = smul.addr %s311, 2
        %s313 = scalar_lea.vmem [#allocation7], %s312
        %p314 = pneg %p86
        %p315 = pneg %p83
        %p316 = pneg %p107
        %p317 = pneg %p104
        %p318 = pneg %p128
        %p319 = pneg %p125
        %p320 = pneg %p154
        %p321 = pneg %p151
        %s322 = smul.u32 2, %s27
        %s323 = smul.u32 32, %s28
        %s324 = smul.u32 2, %s28
        %p326 = scmp.eq.s32.totalorder %s28, 0
        // Predicated region
        $region53: #{tpu_custom_call.1} parent=35 // pred_check
          %p327 = pneg %p326
        $region54: #{tpu_custom_call.1} parent=35 // pred_check_branch
          %329 = sbr.rel (%p327) target = $region56
        $region55: #{tpu_custom_call.1} parent=35 // pred_region
          %330 = vst [vmem:[#allocation2] sm:$0x3] 0.0
          %vm331 = vcmask 1024
          %332 = vst.msk [vmem:[#allocation3] sm:$0x3] %vm331, 0.0
        $region56: #{tpu_custom_call.1} parent=35 // pred_fallthru
          _
        %v333 = vld [vmem:[%s289] sm:$0x3]
        %v334 = vld [vmem:[#allocation2] sm:$0x3]
        %v335 = vld [vmem:[%s280] sm:$0xf]
        %v336 = vld [vmem:[%s280 + $0x4] sm:$0xf]
        %v337 = vld [vmem:[%s280 + $0x8] sm:$0xf]
        %v338 = vld [vmem:[%s280 + $0xc] sm:$0xf]
        %v339 = vld [vmem:[%s280 + $0x10] sm:$0xf]
        %v340 = vld [vmem:[%s280 + $0x14] sm:$0xf]
        %v341 = vld [vmem:[%s280 + $0x18] sm:$0xf]
        %v342 = vld [vmem:[%s280 + $0x1c] sm:$0xf]
        %v343 = vld [vmem:[%s280 + $0x20] sm:$0xf]
        %v344 = vld [vmem:[%s280 + $0x24] sm:$0xf]
        %v345 = vld [vmem:[%s280 + $0x28] sm:$0xf]
        %v346 = vld [vmem:[%s280 + $0x2c] sm:$0xf]
        %v347 = vld [vmem:[%s280 + $0x30] sm:$0xf]
        %v348 = vld [vmem:[%s280 + $0x34] sm:$0xf]
        %v349 = vld [vmem:[%s280 + $0x38] sm:$0xf]
        %v350 = vld [vmem:[%s280 + $0x3c] sm:$0xf]
        %v351 = vld [vmem:[%s280 + $0x40] sm:$0xf]
        %v352 = vld [vmem:[%s280 + $0x44] sm:$0xf]
        %v353 = vld [vmem:[%s280 + $0x48] sm:$0xf]
        %v354 = vld [vmem:[%s280 + $0x4c] sm:$0xf]
        %v355 = vld [vmem:[%s280 + $0x50] sm:$0xf]
        %v356 = vld [vmem:[%s280 + $0x54] sm:$0xf]
        %v357 = vld [vmem:[%s280 + $0x58] sm:$0xf]
        %v358 = vld [vmem:[%s280 + $0x5c] sm:$0xf]
        %v359 = vld [vmem:[%s280 + $0x60] sm:$0xf]
        %v360 = vld [vmem:[%s280 + $0x64] sm:$0xf]
        %v361 = vld [vmem:[%s280 + $0x68] sm:$0xf]
        %v362 = vld [vmem:[%s280 + $0x6c] sm:$0xf]
        %v363 = vld [vmem:[%s280 + $0x70] sm:$0xf]
        %v364 = vld [vmem:[%s280 + $0x74] sm:$0xf]
        %v365 = vld [vmem:[%s280 + $0x78] sm:$0xf]
        %v366 = vld [vmem:[%s280 + $0x7c] sm:$0xf]
        %v367 = vld [vmem:[%s280 + $0x80] sm:$0xf]
        %v368 = vld [vmem:[%s280 + $0x84] sm:$0xf]
        %v369 = vld [vmem:[%s280 + $0x88] sm:$0xf]
        %v370 = vld [vmem:[%s280 + $0x8c] sm:$0xf]
        %v371 = vld [vmem:[%s280 + $0x90] sm:$0xf]
        %v372 = vld [vmem:[%s280 + $0x94] sm:$0xf]
        %v373 = vld [vmem:[%s280 + $0x98] sm:$0xf]
        %v374 = vld [vmem:[%s280 + $0x9c] sm:$0xf]
        %v375 = vld [vmem:[%s280 + $0xa0] sm:$0xf]
        %v376 = vld [vmem:[%s280 + $0xa4] sm:$0xf]
        %v377 = vld [vmem:[%s280 + $0xa8] sm:$0xf]
        %v378 = vld [vmem:[%s280 + $0xac] sm:$0xf]
        %v379 = vld [vmem:[%s280 + $0xb0] sm:$0xf]
        %v380 = vld [vmem:[%s280 + $0xb4] sm:$0xf]
        %v381 = vld [vmem:[%s280 + $0xb8] sm:$0xf]
        %v382 = vld [vmem:[%s280 + $0xbc] sm:$0xf]
        %v383 = vld [vmem:[%s280 + $0xc0] sm:$0xf]
        %v384 = vld [vmem:[%s280 + $0xc4] sm:$0xf]
        %v385 = vld [vmem:[%s280 + $0xc8] sm:$0xf]
        %v386 = vld [vmem:[%s280 + $0xcc] sm:$0xf]
        %v387 = vld [vmem:[%s280 + $0xd0] sm:$0xf]
        %v388 = vld [vmem:[%s280 + $0xd4] sm:$0xf]
        %v389 = vld [vmem:[%s280 + $0xd8] sm:$0xf]
        %v390 = vld [vmem:[%s280 + $0xdc] sm:$0xf]
        %v391 = vld [vmem:[%s280 + $0xe0] sm:$0xf]
        %v392 = vld [vmem:[%s280 + $0xe4] sm:$0xf]
        %v393 = vld [vmem:[%s280 + $0xe8] sm:$0xf]
        %v394 = vld [vmem:[%s280 + $0xec] sm:$0xf]
        %v395 = vld [vmem:[%s280 + $0xf0] sm:$0xf]
        %v396 = vld [vmem:[%s280 + $0xf4] sm:$0xf]
        %v397 = vld [vmem:[%s280 + $0xf8] sm:$0xf]
        %v398 = vld [vmem:[%s280 + $0xfc] sm:$0xf]
        %v401 = vunpack.c.l.s4 1966171168
        %v402 = vunpack.c.0.s8 %v401
        %v403 = vlaneseq
        %v404 = vshrl.u32 %v403, 7
        %v405 = vsub.s32 %v402, %v404
        %v406 = vrot.slane %v333, %v405
        %v407 = vcombine.high %v406, %v406
        %v409 = vunpack.c.l.s4 1966171168
        %v410 = vunpack.c.0.s8 %v409
        %v411 = vlaneseq
        %v412 = vshrl.u32 %v411, 7
        %v413 = vsub.s32 %v410, %v412
        %v414 = vrot.slane %v406, %v413
        %v416 = vunpack.c.l.s4 1966171168
        %v417 = vunpack.c.0.s8 %v416
        %v418 = vlaneseq
        %v419 = vshrl.u32 %v418, 7
        %v420 = vsub.s32 %v417, %v419
        %v421 = vrot.slane %v407, %v420
        %v423 = vpack.i.b16 %v414, %v414
        %v425 = vlaneseq
        %v426 = vshrl.u32 %v425, 7
        %v427 = vsub.s32 0, %v426
        %v428 = vrot.slane %v423, %v427
        %430 = vbcast.lane.c.b16.xlu0 %v428, 256
        %v431 = vpop.permute.xlu0 %430
        %s433 = sor.u32 256, 16
        %434 = vbcast.lane.c.b16.xlu0 %v428, %s433
        %v435 = vpop.permute.xlu0 %434
        %s437 = sor.u32 256, 32
        %438 = vbcast.lane.c.b16.xlu0 %v428, %s437
        %v439 = vpop.permute.xlu0 %438
        %s441 = sor.u32 256, 48
        %442 = vbcast.lane.c.b16.xlu0 %v428, %s441
        %v443 = vpop.permute.xlu0 %442
        %s445 = sor.u32 256, 64
        %446 = vbcast.lane.c.b16.xlu0 %v428, %s445
        %v447 = vpop.permute.xlu0 %446
        %s449 = sor.u32 256, 80
        %450 = vbcast.lane.c.b16.xlu0 %v428, %s449
        %v451 = vpop.permute.xlu0 %450
        %s453 = sor.u32 256, 96
        %454 = vbcast.lane.c.b16.xlu0 %v428, %s453
        %v455 = vpop.permute.xlu0 %454
        %s457 = sor.u32 256, 112
        %458 = vbcast.lane.c.b16.xlu0 %v428, %s457
        %v459 = vpop.permute.xlu0 %458
        %v461 = vpack.i.b16 %v421, %v421
        %v463 = vlaneseq
        %v464 = vshrl.u32 %v463, 7
        %v465 = vsub.s32 0, %v464
        %v466 = vrot.slane %v461, %v465
        %468 = vbcast.lane.c.b16.xlu0 %v466, 256
        %v469 = vpop.permute.xlu0 %468
        %s471 = sor.u32 256, 16
        %472 = vbcast.lane.c.b16.xlu0 %v466, %s471
        %v473 = vpop.permute.xlu0 %472
        %s475 = sor.u32 256, 32
        %476 = vbcast.lane.c.b16.xlu0 %v466, %s475
        %v477 = vpop.permute.xlu0 %476
        %s479 = sor.u32 256, 48
        %480 = vbcast.lane.c.b16.xlu0 %v466, %s479
        %v481 = vpop.permute.xlu0 %480
        %s483 = sor.u32 256, 64
        %484 = vbcast.lane.c.b16.xlu0 %v466, %s483
        %v485 = vpop.permute.xlu0 %484
        %s487 = sor.u32 256, 80
        %488 = vbcast.lane.c.b16.xlu0 %v466, %s487
        %v489 = vpop.permute.xlu0 %488
        %s491 = sor.u32 256, 96
        %492 = vbcast.lane.c.b16.xlu0 %v466, %s491
        %v493 = vpop.permute.xlu0 %492
        %s495 = sor.u32 256, 112
        %496 = vbcast.lane.c.b16.xlu0 %v466, %s495
        %v497 = vpop.permute.xlu0 %496
        %v498 = vshrl.u32 %v414, 16
        %v499 = vpack.i.b16 %v498, %v498
        %v501 = vlaneseq
        %v502 = vshrl.u32 %v501, 7
        %v503 = vsub.s32 0, %v502
        %v504 = vrot.slane %v499, %v503
        %506 = vbcast.lane.c.b16.xlu0 %v504, 256
        %v507 = vpop.permute.xlu0 %506
        %s509 = sor.u32 256, 16
        %510 = vbcast.lane.c.b16.xlu0 %v504, %s509
        %v511 = vpop.permute.xlu0 %510
        %s513 = sor.u32 256, 32
        %514 = vbcast.lane.c.b16.xlu0 %v504, %s513
        %v515 = vpop.permute.xlu0 %514
        %s517 = sor.u32 256, 48
        %518 = vbcast.lane.c.b16.xlu0 %v504, %s517
        %v519 = vpop.permute.xlu0 %518
        %s521 = sor.u32 256, 64
        %522 = vbcast.lane.c.b16.xlu0 %v504, %s521
        %v523 = vpop.permute.xlu0 %522
        %s525 = sor.u32 256, 80
        %526 = vbcast.lane.c.b16.xlu0 %v504, %s525
        %v527 = vpop.permute.xlu0 %526
        %s529 = sor.u32 256, 96
        %530 = vbcast.lane.c.b16.xlu0 %v504, %s529
        %v531 = vpop.permute.xlu0 %530
        %s533 = sor.u32 256, 112
        %534 = vbcast.lane.c.b16.xlu0 %v504, %s533
        %v535 = vpop.permute.xlu0 %534
        %v536 = vshrl.u32 %v421, 16
        %v537 = vpack.i.b16 %v536, %v536
        %v539 = vlaneseq
        %v540 = vshrl.u32 %v539, 7
        %v541 = vsub.s32 0, %v540
        %v542 = vrot.slane %v537, %v541
        %544 = vbcast.lane.c.b16.xlu0 %v542, 256
        %v545 = vpop.permute.xlu0 %544
        %s547 = sor.u32 256, 16
        %548 = vbcast.lane.c.b16.xlu0 %v542, %s547
        %v549 = vpop.permute.xlu0 %548
        %s551 = sor.u32 256, 32
        %552 = vbcast.lane.c.b16.xlu0 %v542, %s551
        %v553 = vpop.permute.xlu0 %552
        %s555 = sor.u32 256, 48
        %556 = vbcast.lane.c.b16.xlu0 %v542, %s555
        %v557 = vpop.permute.xlu0 %556
        %s559 = sor.u32 256, 64
        %560 = vbcast.lane.c.b16.xlu0 %v542, %s559
        %v561 = vpop.permute.xlu0 %560
        %s563 = sor.u32 256, 80
        %564 = vbcast.lane.c.b16.xlu0 %v542, %s563
        %v565 = vpop.permute.xlu0 %564
        %s567 = sor.u32 256, 96
        %568 = vbcast.lane.c.b16.xlu0 %v542, %s567
        %v569 = vpop.permute.xlu0 %568
        %s571 = sor.u32 256, 112
        %572 = vbcast.lane.c.b16.xlu0 %v542, %s571
        %v573 = vpop.permute.xlu0 %572
        %v607 = vunpack.c.l.s4 839922192
        %v608 = vunpack.c.0.s8 %v607
        %v609 = vlaneseq
        %v610 = vshrl.u32 %v609, 7
        %v611 = vsub.s32 %v608, %v610
        %v612 = vrot.slane %v431, %v611
        %v614 = vunpack.c.l.s4 1985246804
        %v615 = vunpack.c.0.s8 %v614
        %v616 = vlaneseq
        %v617 = vshrl.u32 %v616, 7
        %v618 = vsub.s32 %v615, %v617
        %v619 = vrot.slane %v431, %v618
        %v621 = vunpack.c.l.s4 839922192
        %v622 = vunpack.c.0.s8 %v621
        %v623 = vlaneseq
        %v624 = vshrl.u32 %v623, 7
        %v625 = vsub.s32 %v622, %v624
        %v626 = vrot.slane %v435, %v625
        %v628 = vunpack.c.l.s4 1985246804
        %v629 = vunpack.c.0.s8 %v628
        %v630 = vlaneseq
        %v631 = vshrl.u32 %v630, 7
        %v632 = vsub.s32 %v629, %v631
        %v633 = vrot.slane %v435, %v632
        %v635 = vunpack.c.l.s4 839922192
        %v636 = vunpack.c.0.s8 %v635
        %v637 = vlaneseq
        %v638 = vshrl.u32 %v637, 7
        %v639 = vsub.s32 %v636, %v638
        %v640 = vrot.slane %v439, %v639
        %v642 = vunpack.c.l.s4 1985246804
        %v643 = vunpack.c.0.s8 %v642
        %v644 = vlaneseq
        %v645 = vshrl.u32 %v644, 7
        %v646 = vsub.s32 %v643, %v645
        %v647 = vrot.slane %v439, %v646
        %v649 = vunpack.c.l.s4 839922192
        %v650 = vunpack.c.0.s8 %v649
        %v651 = vlaneseq
        %v652 = vshrl.u32 %v651, 7
        %v653 = vsub.s32 %v650, %v652
        %v654 = vrot.slane %v443, %v653
        %v656 = vunpack.c.l.s4 1985246804
        %v657 = vunpack.c.0.s8 %v656
        %v658 = vlaneseq
        %v659 = vshrl.u32 %v658, 7
        %v660 = vsub.s32 %v657, %v659
        %v661 = vrot.slane %v443, %v660
        %v663 = vunpack.c.l.s4 839922192
        %v664 = vunpack.c.0.s8 %v663
        %v665 = vlaneseq
        %v666 = vshrl.u32 %v665, 7
        %v667 = vsub.s32 %v664, %v666
        %v668 = vrot.slane %v447, %v667
        %v670 = vunpack.c.l.s4 1985246804
        %v671 = vunpack.c.0.s8 %v670
        %v672 = vlaneseq
        %v673 = vshrl.u32 %v672, 7
        %v674 = vsub.s32 %v671, %v673
        %v675 = vrot.slane %v447, %v674
        %v677 = vunpack.c.l.s4 839922192
        %v678 = vunpack.c.0.s8 %v677
        %v679 = vlaneseq
        %v680 = vshrl.u32 %v679, 7
        %v681 = vsub.s32 %v678, %v680
        %v682 = vrot.slane %v451, %v681
        %v684 = vunpack.c.l.s4 1985246804
        %v685 = vunpack.c.0.s8 %v684
        %v686 = vlaneseq
        %v687 = vshrl.u32 %v686, 7
        %v688 = vsub.s32 %v685, %v687
        %v689 = vrot.slane %v451, %v688
        %v691 = vunpack.c.l.s4 839922192
        %v692 = vunpack.c.0.s8 %v691
        %v693 = vlaneseq
        %v694 = vshrl.u32 %v693, 7
        %v695 = vsub.s32 %v692, %v694
        %v696 = vrot.slane %v455, %v695
        %v698 = vunpack.c.l.s4 1985246804
        %v699 = vunpack.c.0.s8 %v698
        %v700 = vlaneseq
        %v701 = vshrl.u32 %v700, 7
        %v702 = vsub.s32 %v699, %v701
        %v703 = vrot.slane %v455, %v702
        %v705 = vunpack.c.l.s4 839922192
        %v706 = vunpack.c.0.s8 %v705
        %v707 = vlaneseq
        %v708 = vshrl.u32 %v707, 7
        %v709 = vsub.s32 %v706, %v708
        %v710 = vrot.slane %v459, %v709
        %v712 = vunpack.c.l.s4 1985246804
        %v713 = vunpack.c.0.s8 %v712
        %v714 = vlaneseq
        %v715 = vshrl.u32 %v714, 7
        %v716 = vsub.s32 %v713, %v715
        %v717 = vrot.slane %v459, %v716
        %v719 = vunpack.c.l.s4 839922192
        %v720 = vunpack.c.0.s8 %v719
        %v721 = vlaneseq
        %v722 = vshrl.u32 %v721, 7
        %v723 = vsub.s32 %v720, %v722
        %v724 = vrot.slane %v469, %v723
        %v726 = vunpack.c.l.s4 1985246804
        %v727 = vunpack.c.0.s8 %v726
        %v728 = vlaneseq
        %v729 = vshrl.u32 %v728, 7
        %v730 = vsub.s32 %v727, %v729
        %v731 = vrot.slane %v469, %v730
        %v733 = vunpack.c.l.s4 839922192
        %v734 = vunpack.c.0.s8 %v733
        %v735 = vlaneseq
        %v736 = vshrl.u32 %v735, 7
        %v737 = vsub.s32 %v734, %v736
        %v738 = vrot.slane %v473, %v737
        %v740 = vunpack.c.l.s4 1985246804
        %v741 = vunpack.c.0.s8 %v740
        %v742 = vlaneseq
        %v743 = vshrl.u32 %v742, 7
        %v744 = vsub.s32 %v741, %v743
        %v745 = vrot.slane %v473, %v744
        %v747 = vunpack.c.l.s4 839922192
        %v748 = vunpack.c.0.s8 %v747
        %v749 = vlaneseq
        %v750 = vshrl.u32 %v749, 7
        %v751 = vsub.s32 %v748, %v750
        %v752 = vrot.slane %v477, %v751
        %v754 = vunpack.c.l.s4 1985246804
        %v755 = vunpack.c.0.s8 %v754
        %v756 = vlaneseq
        %v757 = vshrl.u32 %v756, 7
        %v758 = vsub.s32 %v755, %v757
        %v759 = vrot.slane %v477, %v758
        %v761 = vunpack.c.l.s4 839922192
        %v762 = vunpack.c.0.s8 %v761
        %v763 = vlaneseq
        %v764 = vshrl.u32 %v763, 7
        %v765 = vsub.s32 %v762, %v764
        %v766 = vrot.slane %v481, %v765
        %v768 = vunpack.c.l.s4 1985246804
        %v769 = vunpack.c.0.s8 %v768
        %v770 = vlaneseq
        %v771 = vshrl.u32 %v770, 7
        %v772 = vsub.s32 %v769, %v771
        %v773 = vrot.slane %v481, %v772
        %v775 = vunpack.c.l.s4 839922192
        %v776 = vunpack.c.0.s8 %v775
        %v777 = vlaneseq
        %v778 = vshrl.u32 %v777, 7
        %v779 = vsub.s32 %v776, %v778
        %v780 = vrot.slane %v485, %v779
        %v782 = vunpack.c.l.s4 1985246804
        %v783 = vunpack.c.0.s8 %v782
        %v784 = vlaneseq
        %v785 = vshrl.u32 %v784, 7
        %v786 = vsub.s32 %v783, %v785
        %v787 = vrot.slane %v485, %v786
        %v789 = vunpack.c.l.s4 839922192
        %v790 = vunpack.c.0.s8 %v789
        %v791 = vlaneseq
        %v792 = vshrl.u32 %v791, 7
        %v793 = vsub.s32 %v790, %v792
        %v794 = vrot.slane %v489, %v793
        %v796 = vunpack.c.l.s4 1985246804
        %v797 = vunpack.c.0.s8 %v796
        %v798 = vlaneseq
        %v799 = vshrl.u32 %v798, 7
        %v800 = vsub.s32 %v797, %v799
        %v801 = vrot.slane %v489, %v800
        %v803 = vunpack.c.l.s4 839922192
        %v804 = vunpack.c.0.s8 %v803
        %v805 = vlaneseq
        %v806 = vshrl.u32 %v805, 7
        %v807 = vsub.s32 %v804, %v806
        %v808 = vrot.slane %v493, %v807
        %v810 = vunpack.c.l.s4 1985246804
        %v811 = vunpack.c.0.s8 %v810
        %v812 = vlaneseq
        %v813 = vshrl.u32 %v812, 7
        %v814 = vsub.s32 %v811, %v813
        %v815 = vrot.slane %v493, %v814
        %v817 = vunpack.c.l.s4 839922192
        %v818 = vunpack.c.0.s8 %v817
        %v819 = vlaneseq
        %v820 = vshrl.u32 %v819, 7
        %v821 = vsub.s32 %v818, %v820
        %v822 = vrot.slane %v497, %v821
        %v824 = vunpack.c.l.s4 1985246804
        %v825 = vunpack.c.0.s8 %v824
        %v826 = vlaneseq
        %v827 = vshrl.u32 %v826, 7
        %v828 = vsub.s32 %v825, %v827
        %v829 = vrot.slane %v497, %v828
        %v831 = vunpack.c.l.s4 839922192
        %v832 = vunpack.c.0.s8 %v831
        %v833 = vlaneseq
        %v834 = vshrl.u32 %v833, 7
        %v835 = vsub.s32 %v832, %v834
        %v836 = vrot.slane %v507, %v835
        %v838 = vunpack.c.l.s4 1985246804
        %v839 = vunpack.c.0.s8 %v838
        %v840 = vlaneseq
        %v841 = vshrl.u32 %v840, 7
        %v842 = vsub.s32 %v839, %v841
        %v843 = vrot.slane %v507, %v842
        %v845 = vunpack.c.l.s4 839922192
        %v846 = vunpack.c.0.s8 %v845
        %v847 = vlaneseq
        %v848 = vshrl.u32 %v847, 7
        %v849 = vsub.s32 %v846, %v848
        %v850 = vrot.slane %v511, %v849
        %v852 = vunpack.c.l.s4 1985246804
        %v853 = vunpack.c.0.s8 %v852
        %v854 = vlaneseq
        %v855 = vshrl.u32 %v854, 7
        %v856 = vsub.s32 %v853, %v855
        %v857 = vrot.slane %v511, %v856
        %v859 = vunpack.c.l.s4 839922192
        %v860 = vunpack.c.0.s8 %v859
        %v861 = vlaneseq
        %v862 = vshrl.u32 %v861, 7
        %v863 = vsub.s32 %v860, %v862
        %v864 = vrot.slane %v515, %v863
        %v866 = vunpack.c.l.s4 1985246804
        %v867 = vunpack.c.0.s8 %v866
        %v868 = vlaneseq
        %v869 = vshrl.u32 %v868, 7
        %v870 = vsub.s32 %v867, %v869
        %v871 = vrot.slane %v515, %v870
        %v873 = vunpack.c.l.s4 839922192
        %v874 = vunpack.c.0.s8 %v873
        %v875 = vlaneseq
        %v876 = vshrl.u32 %v875, 7
        %v877 = vsub.s32 %v874, %v876
        %v878 = vrot.slane %v519, %v877
        %v880 = vunpack.c.l.s4 1985246804
        %v881 = vunpack.c.0.s8 %v880
        %v882 = vlaneseq
        %v883 = vshrl.u32 %v882, 7
        %v884 = vsub.s32 %v881, %v883
        %v885 = vrot.slane %v519, %v884
        %v887 = vunpack.c.l.s4 839922192
        %v888 = vunpack.c.0.s8 %v887
        %v889 = vlaneseq
        %v890 = vshrl.u32 %v889, 7
        %v891 = vsub.s32 %v888, %v890
        %v892 = vrot.slane %v523, %v891
        %v894 = vunpack.c.l.s4 1985246804
        %v895 = vunpack.c.0.s8 %v894
        %v896 = vlaneseq
        %v897 = vshrl.u32 %v896, 7
        %v898 = vsub.s32 %v895, %v897
        %v899 = vrot.slane %v523, %v898
        %v901 = vunpack.c.l.s4 839922192
        %v902 = vunpack.c.0.s8 %v901
        %v903 = vlaneseq
        %v904 = vshrl.u32 %v903, 7
        %v905 = vsub.s32 %v902, %v904
        %v906 = vrot.slane %v527, %v905
        %v908 = vunpack.c.l.s4 1985246804
        %v909 = vunpack.c.0.s8 %v908
        %v910 = vlaneseq
        %v911 = vshrl.u32 %v910, 7
        %v912 = vsub.s32 %v909, %v911
        %v913 = vrot.slane %v527, %v912
        %v915 = vunpack.c.l.s4 839922192
        %v916 = vunpack.c.0.s8 %v915
        %v917 = vlaneseq
        %v918 = vshrl.u32 %v917, 7
        %v919 = vsub.s32 %v916, %v918
        %v920 = vrot.slane %v531, %v919
        %v922 = vunpack.c.l.s4 1985246804
        %v923 = vunpack.c.0.s8 %v922
        %v924 = vlaneseq
        %v925 = vshrl.u32 %v924, 7
        %v926 = vsub.s32 %v923, %v925
        %v927 = vrot.slane %v531, %v926
        %v929 = vunpack.c.l.s4 839922192
        %v930 = vunpack.c.0.s8 %v929
        %v931 = vlaneseq
        %v932 = vshrl.u32 %v931, 7
        %v933 = vsub.s32 %v930, %v932
        %v934 = vrot.slane %v535, %v933
        %v936 = vunpack.c.l.s4 1985246804
        %v937 = vunpack.c.0.s8 %v936
        %v938 = vlaneseq
        %v939 = vshrl.u32 %v938, 7
        %v940 = vsub.s32 %v937, %v939
        %v941 = vrot.slane %v535, %v940
        %v943 = vunpack.c.l.s4 839922192
        %v944 = vunpack.c.0.s8 %v943
        %v945 = vlaneseq
        %v946 = vshrl.u32 %v945, 7
        %v947 = vsub.s32 %v944, %v946
        %v948 = vrot.slane %v545, %v947
        %v950 = vunpack.c.l.s4 1985246804
        %v951 = vunpack.c.0.s8 %v950
        %v952 = vlaneseq
        %v953 = vshrl.u32 %v952, 7
        %v954 = vsub.s32 %v951, %v953
        %v955 = vrot.slane %v545, %v954
        %v957 = vunpack.c.l.s4 839922192
        %v958 = vunpack.c.0.s8 %v957
        %v959 = vlaneseq
        %v960 = vshrl.u32 %v959, 7
        %v961 = vsub.s32 %v958, %v960
        %v962 = vrot.slane %v549, %v961
        %v964 = vunpack.c.l.s4 1985246804
        %v965 = vunpack.c.0.s8 %v964
        %v966 = vlaneseq
        %v967 = vshrl.u32 %v966, 7
        %v968 = vsub.s32 %v965, %v967
        %v969 = vrot.slane %v549, %v968
        %v971 = vunpack.c.l.s4 839922192
        %v972 = vunpack.c.0.s8 %v971
        %v973 = vlaneseq
        %v974 = vshrl.u32 %v973, 7
        %v975 = vsub.s32 %v972, %v974
        %v976 = vrot.slane %v553, %v975
        %v978 = vunpack.c.l.s4 1985246804
        %v979 = vunpack.c.0.s8 %v978
        %v980 = vlaneseq
        %v981 = vshrl.u32 %v980, 7
        %v982 = vsub.s32 %v979, %v981
        %v983 = vrot.slane %v553, %v982
        %v985 = vunpack.c.l.s4 839922192
        %v986 = vunpack.c.0.s8 %v985
        %v987 = vlaneseq
        %v988 = vshrl.u32 %v987, 7
        %v989 = vsub.s32 %v986, %v988
        %v990 = vrot.slane %v557, %v989
        %v992 = vunpack.c.l.s4 1985246804
        %v993 = vunpack.c.0.s8 %v992
        %v994 = vlaneseq
        %v995 = vshrl.u32 %v994, 7
        %v996 = vsub.s32 %v993, %v995
        %v997 = vrot.slane %v557, %v996
        %v999 = vunpack.c.l.s4 839922192
        %v1000 = vunpack.c.0.s8 %v999
        %v1001 = vlaneseq
        %v1002 = vshrl.u32 %v1001, 7
        %v1003 = vsub.s32 %v1000, %v1002
        %v1004 = vrot.slane %v561, %v1003
        %v1006 = vunpack.c.l.s4 1985246804
        %v1007 = vunpack.c.0.s8 %v1006
        %v1008 = vlaneseq
        %v1009 = vshrl.u32 %v1008, 7
        %v1010 = vsub.s32 %v1007, %v1009
        %v1011 = vrot.slane %v561, %v1010
        %v1013 = vunpack.c.l.s4 839922192
        %v1014 = vunpack.c.0.s8 %v1013
        %v1015 = vlaneseq
        %v1016 = vshrl.u32 %v1015, 7
        %v1017 = vsub.s32 %v1014, %v1016
        %v1018 = vrot.slane %v565, %v1017
        %v1020 = vunpack.c.l.s4 1985246804
        %v1021 = vunpack.c.0.s8 %v1020
        %v1022 = vlaneseq
        %v1023 = vshrl.u32 %v1022, 7
        %v1024 = vsub.s32 %v1021, %v1023
        %v1025 = vrot.slane %v565, %v1024
        %v1027 = vunpack.c.l.s4 839922192
        %v1028 = vunpack.c.0.s8 %v1027
        %v1029 = vlaneseq
        %v1030 = vshrl.u32 %v1029, 7
        %v1031 = vsub.s32 %v1028, %v1030
        %v1032 = vrot.slane %v569, %v1031
        %v1034 = vunpack.c.l.s4 1985246804
        %v1035 = vunpack.c.0.s8 %v1034
        %v1036 = vlaneseq
        %v1037 = vshrl.u32 %v1036, 7
        %v1038 = vsub.s32 %v1035, %v1037
        %v1039 = vrot.slane %v569, %v1038
        %v1041 = vunpack.c.l.s4 839922192
        %v1042 = vunpack.c.0.s8 %v1041
        %v1043 = vlaneseq
        %v1044 = vshrl.u32 %v1043, 7
        %v1045 = vsub.s32 %v1042, %v1044
        %v1046 = vrot.slane %v573, %v1045
        %v1048 = vunpack.c.l.s4 1985246804
        %v1049 = vunpack.c.0.s8 %v1048
        %v1050 = vlaneseq
        %v1051 = vshrl.u32 %v1050, 7
        %v1052 = vsub.s32 %v1049, %v1051
        %v1053 = vrot.slane %v573, %v1052
        %v1118 = vmul.bf16 %v335, %v612
        %v1119 = vmul.bf16 %v336, %v619
        %v1120 = vmul.bf16 %v337, %v626
        %v1121 = vmul.bf16 %v338, %v633
        %v1122 = vmul.bf16 %v339, %v640
        %v1123 = vmul.bf16 %v340, %v647
        %v1124 = vmul.bf16 %v341, %v654
        %v1125 = vmul.bf16 %v342, %v661
        %v1126 = vmul.bf16 %v343, %v668
        %v1127 = vmul.bf16 %v344, %v675
        %v1128 = vmul.bf16 %v345, %v682
        %v1129 = vmul.bf16 %v346, %v689
        %v1130 = vmul.bf16 %v347, %v696
        %v1131 = vmul.bf16 %v348, %v703
        %v1132 = vmul.bf16 %v349, %v710
        %v1133 = vmul.bf16 %v350, %v717
        %v1134 = vmul.bf16 %v351, %v724
        %v1135 = vmul.bf16 %v352, %v731
        %v1136 = vmul.bf16 %v353, %v738
        %v1137 = vmul.bf16 %v354, %v745
        %v1138 = vmul.bf16 %v355, %v752
        %v1139 = vmul.bf16 %v356, %v759
        %v1140 = vmul.bf16 %v357, %v766
        %v1141 = vmul.bf16 %v358, %v773
        %v1142 = vmul.bf16 %v359, %v780
        %v1143 = vmul.bf16 %v360, %v787
        %v1144 = vmul.bf16 %v361, %v794
        %v1145 = vmul.bf16 %v362, %v801
        %v1146 = vmul.bf16 %v363, %v808
        %v1147 = vmul.bf16 %v364, %v815
        %v1148 = vmul.bf16 %v365, %v822
        %v1149 = vmul.bf16 %v366, %v829
        %v1150 = vmul.bf16 %v367, %v836
        %v1151 = vmul.bf16 %v368, %v843
        %v1152 = vmul.bf16 %v369, %v850
        %v1153 = vmul.bf16 %v370, %v857
        %v1154 = vmul.bf16 %v371, %v864
        %v1155 = vmul.bf16 %v372, %v871
        %v1156 = vmul.bf16 %v373, %v878
        %v1157 = vmul.bf16 %v374, %v885
        %v1158 = vmul.bf16 %v375, %v892
        %v1159 = vmul.bf16 %v376, %v899
        %v1160 = vmul.bf16 %v377, %v906
        %v1161 = vmul.bf16 %v378, %v913
        %v1162 = vmul.bf16 %v379, %v920
        %v1163 = vmul.bf16 %v380, %v927
        %v1164 = vmul.bf16 %v381, %v934
        %v1165 = vmul.bf16 %v382, %v941
        %v1166 = vmul.bf16 %v383, %v948
        %v1167 = vmul.bf16 %v384, %v955
        %v1168 = vmul.bf16 %v385, %v962
        %v1169 = vmul.bf16 %v386, %v969
        %v1170 = vmul.bf16 %v387, %v976
        %v1171 = vmul.bf16 %v388, %v983
        %v1172 = vmul.bf16 %v389, %v990
        %v1173 = vmul.bf16 %v390, %v997
        %v1174 = vmul.bf16 %v391, %v1004
        %v1175 = vmul.bf16 %v392, %v1011
        %v1176 = vmul.bf16 %v393, %v1018
        %v1177 = vmul.bf16 %v394, %v1025
        %v1178 = vmul.bf16 %v395, %v1032
        %v1179 = vmul.bf16 %v396, %v1039
        %v1180 = vmul.bf16 %v397, %v1046
        %v1181 = vmul.bf16 %v398, %v1053
        %v1182 = vunpack.c.l.bf16 %v1118
        %v1183 = vunpack.c.l.bf16 %v1119
        %v1184 = vunpack.c.l.bf16 %v1120
        %v1185 = vunpack.c.l.bf16 %v1121
        %v1186 = vunpack.c.l.bf16 %v1122
        %v1187 = vunpack.c.l.bf16 %v1123
        %v1188 = vunpack.c.l.bf16 %v1124
        %v1189 = vunpack.c.l.bf16 %v1125
        %v1190 = vunpack.c.l.bf16 %v1126
        %v1191 = vunpack.c.l.bf16 %v1127
        %v1192 = vunpack.c.l.bf16 %v1128
        %v1193 = vunpack.c.l.bf16 %v1129
        %v1194 = vunpack.c.l.bf16 %v1130
        %v1195 = vunpack.c.l.bf16 %v1131
        %v1196 = vunpack.c.l.bf16 %v1132
        %v1197 = vunpack.c.l.bf16 %v1133
        %v1198 = vunpack.c.l.bf16 %v1134
        %v1199 = vunpack.c.l.bf16 %v1135
        %v1200 = vunpack.c.l.bf16 %v1136
        %v1201 = vunpack.c.l.bf16 %v1137
        %v1202 = vunpack.c.l.bf16 %v1138
        %v1203 = vunpack.c.l.bf16 %v1139
        %v1204 = vunpack.c.l.bf16 %v1140
        %v1205 = vunpack.c.l.bf16 %v1141
        %v1206 = vunpack.c.l.bf16 %v1142
        %v1207 = vunpack.c.l.bf16 %v1143
        %v1208 = vunpack.c.l.bf16 %v1144
        %v1209 = vunpack.c.l.bf16 %v1145
        %v1210 = vunpack.c.l.bf16 %v1146
        %v1211 = vunpack.c.l.bf16 %v1147
        %v1212 = vunpack.c.l.bf16 %v1148
        %v1213 = vunpack.c.l.bf16 %v1149
        %v1214 = vunpack.c.l.bf16 %v1150
        %v1215 = vunpack.c.l.bf16 %v1151
        %v1216 = vunpack.c.l.bf16 %v1152
        %v1217 = vunpack.c.l.bf16 %v1153
        %v1218 = vunpack.c.l.bf16 %v1154
        %v1219 = vunpack.c.l.bf16 %v1155
        %v1220 = vunpack.c.l.bf16 %v1156
        %v1221 = vunpack.c.l.bf16 %v1157
        %v1222 = vunpack.c.l.bf16 %v1158
        %v1223 = vunpack.c.l.bf16 %v1159
        %v1224 = vunpack.c.l.bf16 %v1160
        %v1225 = vunpack.c.l.bf16 %v1161
        %v1226 = vunpack.c.l.bf16 %v1162
        %v1227 = vunpack.c.l.bf16 %v1163
        %v1228 = vunpack.c.l.bf16 %v1164
        %v1229 = vunpack.c.l.bf16 %v1165
        %v1230 = vunpack.c.l.bf16 %v1166
        %v1231 = vunpack.c.l.bf16 %v1167
        %v1232 = vunpack.c.l.bf16 %v1168
        %v1233 = vunpack.c.l.bf16 %v1169
        %v1234 = vunpack.c.l.bf16 %v1170
        %v1235 = vunpack.c.l.bf16 %v1171
        %v1236 = vunpack.c.l.bf16 %v1172
        %v1237 = vunpack.c.l.bf16 %v1173
        %v1238 = vunpack.c.l.bf16 %v1174
        %v1239 = vunpack.c.l.bf16 %v1175
        %v1240 = vunpack.c.l.bf16 %v1176
        %v1241 = vunpack.c.l.bf16 %v1177
        %v1242 = vunpack.c.l.bf16 %v1178
        %v1243 = vunpack.c.l.bf16 %v1179
        %v1244 = vunpack.c.l.bf16 %v1180
        %v1245 = vunpack.c.l.bf16 %v1181
        %v1246 = vadd.f32 %v1182, %v1183
        %v1247 = vadd.f32 %v1246, %v1184
        %v1248 = vadd.f32 %v1247, %v1185
        %v1249 = vadd.f32 %v1248, %v1186
        %v1250 = vadd.f32 %v1249, %v1187
        %v1251 = vadd.f32 %v1250, %v1188
        %v1252 = vadd.f32 %v1251, %v1189
        %v1253 = vadd.f32 %v1252, %v1190
        %v1254 = vadd.f32 %v1253, %v1191
        %v1255 = vadd.f32 %v1254, %v1192
        %v1256 = vadd.f32 %v1255, %v1193
        %v1257 = vadd.f32 %v1256, %v1194
        %v1258 = vadd.f32 %v1257, %v1195
        %v1259 = vadd.f32 %v1258, %v1196
        %v1260 = vadd.f32 %v1259, %v1197
        %v1261 = vadd.f32 %v1260, %v1198
        %v1262 = vadd.f32 %v1261, %v1199
        %v1263 = vadd.f32 %v1262, %v1200
        %v1264 = vadd.f32 %v1263, %v1201
        %v1265 = vadd.f32 %v1264, %v1202
        %v1266 = vadd.f32 %v1265, %v1203
        %v1267 = vadd.f32 %v1266, %v1204
        %v1268 = vadd.f32 %v1267, %v1205
        %v1269 = vadd.f32 %v1268, %v1206
        %v1270 = vadd.f32 %v1269, %v1207
        %v1271 = vadd.f32 %v1270, %v1208
        %v1272 = vadd.f32 %v1271, %v1209
        %v1273 = vadd.f32 %v1272, %v1210
        %v1274 = vadd.f32 %v1273, %v1211
        %v1275 = vadd.f32 %v1274, %v1212
        %v1276 = vadd.f32 %v1275, %v1213
        %v1277 = vrot.slane %v1276, 4
        %v1278 = vadd.f32 %v1276, %v1277
        %v1279 = vrot.slane %v1278, 2
        %v1280 = vadd.f32 %v1278, %v1279
        %v1281 = vrot.slane %v1280, 1
        %v1282 = vadd.f32 %v1280, %v1281
        %v1283 = vadd.f32 %v1214, %v1215
        %v1284 = vadd.f32 %v1283, %v1216
        %v1285 = vadd.f32 %v1284, %v1217
        %v1286 = vadd.f32 %v1285, %v1218
        %v1287 = vadd.f32 %v1286, %v1219
        %v1288 = vadd.f32 %v1287, %v1220
        %v1289 = vadd.f32 %v1288, %v1221
        %v1290 = vadd.f32 %v1289, %v1222
        %v1291 = vadd.f32 %v1290, %v1223
        %v1292 = vadd.f32 %v1291, %v1224
        %v1293 = vadd.f32 %v1292, %v1225
        %v1294 = vadd.f32 %v1293, %v1226
        %v1295 = vadd.f32 %v1294, %v1227
        %v1296 = vadd.f32 %v1295, %v1228
        %v1297 = vadd.f32 %v1296, %v1229
        %v1298 = vadd.f32 %v1297, %v1230
        %v1299 = vadd.f32 %v1298, %v1231
        %v1300 = vadd.f32 %v1299, %v1232
        %v1301 = vadd.f32 %v1300, %v1233
        %v1302 = vadd.f32 %v1301, %v1234
        %v1303 = vadd.f32 %v1302, %v1235
        %v1304 = vadd.f32 %v1303, %v1236
        %v1305 = vadd.f32 %v1304, %v1237
        %v1306 = vadd.f32 %v1305, %v1238
        %v1307 = vadd.f32 %v1306, %v1239
        %v1308 = vadd.f32 %v1307, %v1240
        %v1309 = vadd.f32 %v1308, %v1241
        %v1310 = vadd.f32 %v1309, %v1242
        %v1311 = vadd.f32 %v1310, %v1243
        %v1312 = vadd.f32 %v1311, %v1244
        %v1313 = vadd.f32 %v1312, %v1245
        %v1314 = vrot.slane %v1313, 4
        %v1315 = vadd.f32 %v1313, %v1314
        %v1316 = vrot.slane %v1315, 2
        %v1317 = vadd.f32 %v1315, %v1316
        %v1318 = vrot.slane %v1317, 1
        %v1319 = vadd.f32 %v1317, %v1318
        %vm1322 = vcmask 1041409
        %v1323 = vsel %vm1322, %v1319, %v1282
        %v1325 = vadd.f32 %v334, %v1323
        %1326 = vst [vmem:[#allocation2] sm:$0x3] %v1325
        %v1327 = vld [vmem:[#allocation3] sm:$0x3]
        %v1328 = vunpack.c.l.bf16 %v333
        %v1331 = vunpack.c.l.s4 1983009808
        %v1332 = vunpack.c.0.s8 %v1331
        %v1333 = vlaneseq
        %v1334 = vshrl.u32 %v1333, 7
        %v1335 = vsub.s32 %v1332, %v1334
        %v1336 = vrot.slane %v1328, %v1335
        %v1337 = vcombine.high %v1336, %v1336
        %vm1340 = vcmask 1041408
        %v1341 = vsel %vm1340, %v1336, 0.0
        %v1342 = vsel %vm1340, %v1337, 0.0
        %v1343 = vadd.f32 %v1341, %v1342
        %1344 = vadd.xlane.f32.xlu0 %v1343
        %v1345 = vpop.xlane.xlu0 %1344
        %v1346 = vadd.f32 %v1327, %v1345
        %vm1347 = vcmask 1024
        %1348 = vst.msk [vmem:[#allocation3] sm:$0x3] %vm1347, %v1346
        %p1349 = scmp.eq.s32.totalorder %s28, 1
        // Predicated region
        $region57: #{tpu_custom_call.1} parent=35 // pred_check
          %p1350 = pneg %p1349
        $region58: #{tpu_custom_call.1} parent=35 // pred_check_branch
          %1352 = sbr.rel (%p1350) target = $region60
        $region59: #{tpu_custom_call.1} parent=35 // pred_region
          %v1353 = vld [vmem:[#allocation3] sm:$0x3]
          %v1354 = vmax.f32 %v1353, 1.0
          %v1355 = vrcp.pop %v1354
          %v1356 = vld [vmem:[#allocation2] sm:$0x3]
          %1358 = vset.pattern.permute.xlu0 0
          %1359 = vperm.xlu0 %1358, %v1355
          %v1360 = vpop.permute.xlu0 %1359
          %v1362 = vmul.f32 %v1356, %v1360
          %v1363 = vpack.c.bf16 %v1362, %v1362
          %v1364 = vld [vmem:[#allocation9] sm:$0xf]
          %v1365 = vld [vmem:[#allocation9 + $0x4] sm:$0xf]
          %v1366 = vld [vmem:[#allocation9 + $0x8] sm:$0xf]
          %v1367 = vld [vmem:[#allocation9 + $0xc] sm:$0xf]
          %v1368 = vld [vmem:[#allocation9 + $0x10] sm:$0xf]
          %v1369 = vld [vmem:[#allocation9 + $0x14] sm:$0xf]
          %v1370 = vld [vmem:[#allocation9 + $0x18] sm:$0xf]
          %v1371 = vld [vmem:[#allocation9 + $0x1c] sm:$0xf]
          %v1372 = vld [vmem:[#allocation9 + $0x20] sm:$0xf]
          %v1373 = vld [vmem:[#allocation9 + $0x24] sm:$0xf]
          %v1374 = vld [vmem:[#allocation9 + $0x28] sm:$0xf]
          %v1375 = vld [vmem:[#allocation9 + $0x2c] sm:$0xf]
          %v1376 = vld [vmem:[#allocation9 + $0x30] sm:$0xf]
          %v1377 = vld [vmem:[#allocation9 + $0x34] sm:$0xf]
          %v1378 = vld [vmem:[#allocation9 + $0x38] sm:$0xf]
          %v1379 = vld [vmem:[#allocation9 + $0x3c] sm:$0xf]
          %v1396 = vunpack.c.l.b16 %v1364
          %v1397 = vunpack.c.l.b16 %v1365
          %v1398 = vunpack.c.l.b16 %v1366
          %v1399 = vunpack.c.l.b16 %v1367
          %v1400 = vunpack.c.l.b16 %v1368
          %v1401 = vunpack.c.l.b16 %v1369
          %v1402 = vunpack.c.l.b16 %v1370
          %v1403 = vunpack.c.l.b16 %v1371
          %v1404 = vunpack.c.l.b16 %v1372
          %v1405 = vunpack.c.l.b16 %v1373
          %v1406 = vunpack.c.l.b16 %v1374
          %v1407 = vunpack.c.l.b16 %v1375
          %v1408 = vunpack.c.l.b16 %v1376
          %v1409 = vunpack.c.l.b16 %v1377
          %v1410 = vunpack.c.l.b16 %v1378
          %v1411 = vunpack.c.l.b16 %v1379
          %v1412 = vpack.c.b16 %v1397, %v1396
          %v1413 = vpack.c.b16 %v1399, %v1398
          %v1414 = vpack.c.b16 %v1401, %v1400
          %v1415 = vpack.c.b16 %v1403, %v1402
          %v1416 = vpack.c.b16 %v1405, %v1404
          %v1417 = vpack.c.b16 %v1407, %v1406
          %v1418 = vpack.c.b16 %v1409, %v1408
          %v1419 = vpack.c.b16 %v1411, %v1410
          %1428 = vmatprep.subr.bf16.mxu0 0
          %1429 = vmatpush1.bf16.msra.mxu0 %v1412
          %1430 = vmatprep.subr.bf16.mxu0 0
          %1431 = vmatpush1.bf16.msra.mxu0 %v1413
          %1432 = vmatprep.subr.bf16.mxu0 0
          %1433 = vmatpush1.bf16.msra.mxu0 %v1414
          %1434 = vmatprep.subr.bf16.mxu0 0
          %1435 = vmatpush1.bf16.msra.mxu0 %v1415
          %1436 = vmatprep.subr.bf16.mxu0 0
          %1437 = vmatpush1.bf16.msra.mxu0 %v1416
          %1438 = vmatprep.subr.bf16.mxu0 0
          %1439 = vmatpush1.bf16.msra.mxu0 %v1417
          %1440 = vmatprep.subr.bf16.mxu0 0
          %1441 = vmatpush1.bf16.msra.mxu0 %v1418
          %1442 = vmatprep.subr.bf16.mxu0 0
          %1443 = vmatpush1.bf16.msra.mxu0 %v1419
          %1444 = vmatprep.subr.bf16.mxu0 0
          %1445 = vmatpush1.bf16.msra.mxu0 0
          %1446 = vmatprep.subr.bf16.mxu0 0
          %1447 = vmatpush1.bf16.msra.mxu0 0
          %1448 = vmatprep.subr.bf16.mxu0 0
          %1449 = vmatpush1.bf16.msra.mxu0 0
          %1450 = vmatprep.subr.bf16.mxu0 0
          %1451 = vmatpush1.bf16.msra.mxu0 0
          %1452 = vmatprep.subr.bf16.mxu0 0
          %1453 = vmatpush1.bf16.msra.mxu0 0
          %1454 = vmatprep.subr.bf16.mxu0 0
          %1455 = vmatpush1.bf16.msra.mxu0 0
          %1456 = vmatprep.subr.bf16.mxu0 0
          %1457 = vmatpush1.bf16.msra.mxu0 0
          %1458 = vmatprep.subr.bf16.mxu0 0
          %1459 = vmatpush1.bf16.msra.mxu0 0
          %1460 = vmatprep.mubr.bf16.mxu0 0
          %1461 = vmatmul.mubr.bf16.gmra.mrb[0].mxu0 %v1363
          %v1462 = vpop.f32.mrb[0].mxu0
          %v1463 = vadd.f32 0.0, %v1462
          %v1464 = vpop.f32.mrb[0].mxu0
          %v1465 = vpop.f32.mrb[0].mxu0
          %v1466 = vpop.f32.mrb[0].mxu0
          %1467 = vdwg.mxu0
          %v1468 = vpack.c.bf16 %v1463, %v1463
          %v1469 = vld [vmem:[#allocation10] sm:$0xf]
          %v1470 = vld [vmem:[#allocation10 + $0x4] sm:$0xf]
          %v1471 = vld [vmem:[#allocation10 + $0x8] sm:$0xf]
          %v1472 = vld [vmem:[#allocation10 + $0xc] sm:$0xf]
          %v1473 = vld [vmem:[#allocation10 + $0x10] sm:$0xf]
          %v1474 = vld [vmem:[#allocation10 + $0x14] sm:$0xf]
          %v1475 = vld [vmem:[#allocation10 + $0x18] sm:$0xf]
          %v1476 = vld [vmem:[#allocation10 + $0x1c] sm:$0xf]
          %v1477 = vld [vmem:[#allocation10 + $0x20] sm:$0xf]
          %v1478 = vld [vmem:[#allocation10 + $0x24] sm:$0xf]
          %v1479 = vld [vmem:[#allocation10 + $0x28] sm:$0xf]
          %v1480 = vld [vmem:[#allocation10 + $0x2c] sm:$0xf]
          %v1481 = vld [vmem:[#allocation10 + $0x30] sm:$0xf]
          %v1482 = vld [vmem:[#allocation10 + $0x34] sm:$0xf]
          %v1483 = vld [vmem:[#allocation10 + $0x38] sm:$0xf]
          %v1484 = vld [vmem:[#allocation10 + $0x3c] sm:$0xf]
          %v1501 = vunpack.c.l.b16 %v1469
          %v1502 = vunpack.c.l.b16 %v1470
          %v1503 = vunpack.c.l.b16 %v1471
          %v1504 = vunpack.c.l.b16 %v1472
          %v1505 = vunpack.c.l.b16 %v1473
          %v1506 = vunpack.c.l.b16 %v1474
          %v1507 = vunpack.c.l.b16 %v1475
          %v1508 = vunpack.c.l.b16 %v1476
          %v1509 = vunpack.c.l.b16 %v1477
          %v1510 = vunpack.c.l.b16 %v1478
          %v1511 = vunpack.c.l.b16 %v1479
          %v1512 = vunpack.c.l.b16 %v1480
          %v1513 = vunpack.c.l.b16 %v1481
          %v1514 = vunpack.c.l.b16 %v1482
          %v1515 = vunpack.c.l.b16 %v1483
          %v1516 = vunpack.c.l.b16 %v1484
          %v1517 = vpack.c.b16 %v1502, %v1501
          %v1518 = vpack.c.b16 %v1504, %v1503
          %v1519 = vpack.c.b16 %v1506, %v1505
          %v1520 = vpack.c.b16 %v1508, %v1507
          %v1521 = vpack.c.b16 %v1510, %v1509
          %v1522 = vpack.c.b16 %v1512, %v1511
          %v1523 = vpack.c.b16 %v1514, %v1513
          %v1524 = vpack.c.b16 %v1516, %v1515
          %1533 = vmatprep.subr.bf16.mxu0 0
          %1534 = vmatpush1.bf16.msra.mxu0 %v1517
          %1535 = vmatprep.subr.bf16.mxu0 0
          %1536 = vmatpush1.bf16.msra.mxu0 %v1518
          %1537 = vmatprep.subr.bf16.mxu0 0
          %1538 = vmatpush1.bf16.msra.mxu0 %v1519
          %1539 = vmatprep.subr.bf16.mxu0 0
          %1540 = vmatpush1.bf16.msra.mxu0 %v1520
          %1541 = vmatprep.subr.bf16.mxu0 0
          %1542 = vmatpush1.bf16.msra.mxu0 %v1521
          %1543 = vmatprep.subr.bf16.mxu0 0
          %1544 = vmatpush1.bf16.msra.mxu0 %v1522
          %1545 = vmatprep.subr.bf16.mxu0 0
          %1546 = vmatpush1.bf16.msra.mxu0 %v1523
          %1547 = vmatprep.subr.bf16.mxu0 0
          %1548 = vmatpush1.bf16.msra.mxu0 %v1524
          %1549 = vmatprep.subr.bf16.mxu0 0
          %1550 = vmatpush1.bf16.msra.mxu0 0
          %1551 = vmatprep.subr.bf16.mxu0 0
          %1552 = vmatpush1.bf16.msra.mxu0 0
          %1553 = vmatprep.subr.bf16.mxu0 0
          %1554 = vmatpush1.bf16.msra.mxu0 0
          %1555 = vmatprep.subr.bf16.mxu0 0
          %1556 = vmatpush1.bf16.msra.mxu0 0
          %1557 = vmatprep.subr.bf16.mxu0 0
          %1558 = vmatpush1.bf16.msra.mxu0 0
          %1559 = vmatprep.subr.bf16.mxu0 0
          %1560 = vmatpush1.bf16.msra.mxu0 0
          %1561 = vmatprep.subr.bf16.mxu0 0
          %1562 = vmatpush1.bf16.msra.mxu0 0
          %1563 = vmatprep.subr.bf16.mxu0 0
          %1564 = vmatpush1.bf16.msra.mxu0 0
          %1565 = vmatprep.mubr.bf16.mxu0 0
          %1566 = vmatmul.mubr.bf16.gmra.mrb[0].mxu0 %v1468
          %v1567 = vpop.f32.mrb[0].mxu0
          %v1568 = vadd.f32 0.0, %v1567
          %v1569 = vpop.f32.mrb[0].mxu0
          %v1570 = vpop.f32.mrb[0].mxu0
          %v1571 = vpop.f32.mrb[0].mxu0
          %1572 = vdwg.mxu0
          %1573 = vst [vmem:[#allocation12] sm:$0x3] %v1568
        $region60: #{tpu_custom_call.1} parent=35 // pred_fallthru
          _
        // Predicated region
        $region61: #{tpu_custom_call.1} parent=35 // pred_check
          %p1574 = pneg %p151
        $region62: #{tpu_custom_call.1} parent=35 // pred_check_branch
          %1576 = sbr.rel (%p1574) target = $region64
        $region63: #{tpu_custom_call.1} parent=35 // pred_region
          %s1578 = ssub.s32 32, 32
          %1579 = vsyncadd [#allocation6], %s1578
          %s1580 = smul.addr %s27, 32
          %s1581 = scalar_lea.hbm %s4, %s1580
          %s1583 = sshll.u32 [#allocation12], 4
          %s1584 = int_to_ptr.vmem [resolvable:$true] %s1583
          %1586 = dma.vmem_to_hbm [thread:$0]  %s1584, 32, %s1581, [#allocation6]
        $region64: #{tpu_custom_call.1} parent=35 // pred_fallthru
          _
        // Predicated region
        $region65: #{tpu_custom_call.1} parent=35 // pred_check
          %p1587 = pneg %p151
        $region66: #{tpu_custom_call.1} parent=35 // pred_check_branch
          %1589 = sbr.rel (%p1587) target = $region68
        $region67: #{tpu_custom_call.1} parent=35 // pred_region
          %1590 = dma.done [#allocation6], 32
        $region68: #{tpu_custom_call.1} parent=35 // pred_fallthru
          _
      $region36: #{tpu_custom_call.1} parent=5 // pred_fallthru
        _
      %p1591 = scmp.le.s32.totalorder 2, %s18
      // Predicated region
      $region69: #{tpu_custom_call.1} parent=5 // pred_check
        %p1592 = pneg %p1591
      $region70: #{tpu_custom_call.1} parent=5 // pred_check_branch
        %1594 = sbr.rel (%p1592) target = $region72
      $region71: #{tpu_custom_call.1} parent=5 // pred_region
        %s1595 = ssub.s32 %s18, 2
      $region72: #{tpu_custom_call.1} parent=5 // pred_fallthru
        _
    $region6: #{tpu_custom_call.1} parent=1 // loop_footer
      %s22 = sadd.s32 1, %s18
    $region7: #{tpu_custom_call.1} parent=1 // loop_footer_branch
      %17 = sbr.rel target = $region3
    $region8: #{tpu_custom_call.1} parent=1 // loop_exit
      _
    %1596 = vsyncpa [#allocation5], 1
    %s1597 = scalar_lea.sflag [#allocation5], 1
    %1598 = vsyncpa %s1597, 1
    %1599 = vsyncpa [#allocation8], 1
    %s1600 = scalar_lea.sflag [#allocation8], 1
    %1601 = vsyncpa %s1600, 1
    %1602 = vsyncpa [#allocation11], 1
    %1603 = vsyncpa [#allocation6], 1
    %s1604 = scalar_lea.sflag [#allocation6], 1
    %1605 = vsyncpa %s1604, 1

</llo_original>
